<compile_context>
chip_gen: v7x
topology: tpu7x:2x2x1
jax: 0.10.0
libtpu: 0.0.40
codegen_flags: <defaults>
</compile_context>

<pallas_src>
import functools

import jax
import jax.numpy as jnp
from jax.experimental import pallas as pl
from jax.experimental.pallas import tpu as pltpu


def _round_up(x, m):
    return ((x + m - 1) // m) * m


def _cluster_mean_pool_kernel(ids_ref, inv_ref, x_ref, out_ref, sums_ref):
    """Grid: (F tiles [parallel], N tiles [arbitrary/reduction])."""
    k = pl.program_id(1)

    @pl.when(k == 0)
    def _init():
        sums_ref[...] = jnp.zeros_like(sums_ref)

    tn = x_ref.shape[0]
    c_pad = sums_ref.shape[0]

    # ids row is resident in VMEM (copied once); slice the current N-tile out of
    # it with a lane-aligned dynamic slice instead of re-DMAing it every step.
    start = pl.multiple_of(k * tn, 128)
    ids = ids_ref[:, pl.ds(start, tn)]                  # [1, TN] int32, lane dense
    x = x_ref[...]                                      # [TN, TF] native dtype

    # One-hot directly in [C, N] orientation (no XLU transpose); the iota
    # generator is only [C, 1] — the compare broadcasts it across lanes.
    iota_c = jax.lax.broadcasted_iota(jnp.int32, (c_pad, 1), 0)
    onehot_cn = (iota_c == ids).astype(x.dtype)         # [C, TN]

    # Per-cluster partial feature sums on the MXU: [C, TN] @ [TN, TF] -> [C, TF].
    sums_ref[...] += jnp.dot(onehot_cn, x, preferred_element_type=jnp.float32)

    @pl.when(k == pl.num_programs(1) - 1)
    def _finalize():
        # 1/count was precomputed in the wrapper (depends only on ids), so the
        # inner loop contains no counts reduce / reciprocal work.
        out_ref[...] = (sums_ref[...] * inv_ref[...]).astype(out_ref.dtype)

    # TODO(synk): pool_type='max' (global_max_pool) variant not implemented;
    # only the 'mean' path of the reference module is exercised here.


@functools.partial(jax.jit, static_argnames=("num_clusters",))
def _cluster_mean_pool_call(x, ids, num_clusters):
    n, f = x.shape

    # Pad C to sublane multiple (8) and F to lane multiple (128) so the output
    # stores are dense; padding is sliced off below.
    c_pad = _round_up(max(int(num_clusters), 1), 8)
    f_pad = _round_up(f, 128)

    # N tile: 512 rows (~85%+ of HBM roofline per measured Pallas tiling data);
    # for small N use a single tile rounded up to 128 so the pad stays minimal.
    tn = 512 if n >= 512 else _round_up(max(n, 1), 128)
    n_pad = _round_up(n, tn)

    # F tile: as large as alignment allows, then shrink to (a) keep >=2 blocks
    # on the parallel F axis so both v7x TensorCores get work, and (b) stay well
    # under v7x's 64 MiB physical VMEM (one portable config for v5e/v6e/v7x).
    if f_pad % 512 == 0:
        tf = 512
    elif f_pad % 256 == 0:
        tf = 256
    else:
        tf = 128

    def vmem_estimate(tf_):
        # sums scratch + double-buffered out + double-buffered X tile
        # + resident ids row + inv column (counted at 4 B/elem).
        return 4 * (3 * c_pad * tf_ + 2 * tn * tf_ + n_pad + c_pad)

    while tf > 128 and (f_pad // tf < 2 or vmem_estimate(tf) > (40 << 20)):
        tf //= 2

    # Skip the full HBM round-trip pad of X when shapes are already aligned.
    if n_pad == n and f_pad == f:
        x_p = x
    else:
        x_p = jnp.pad(x, ((0, n_pad - n), (0, f_pad - f)))

    # Padded nodes get an out-of-range cluster id -> all-zero one-hot row.
    if n_pad == n:
        ids_row = ids[None, :]
    else:
        ids_row = jnp.pad(ids, (0, n_pad - n), constant_values=c_pad)[None, :]

    # Counts depend only on ids: compute 1/count once here (tiny O(N) scatter)
    # instead of a per-(F tile, N tile) cross-lane reduce inside the kernel.
    counts = jnp.zeros((c_pad,), jnp.float32).at[ids].add(1.0)
    inv_counts = (1.0 / jnp.maximum(counts, 1.0))[:, None]        # [c_pad, 1]

    grid = (f_pad // tf, n_pad // tn)

    out = pl.pallas_call(
        _cluster_mean_pool_kernel,
        out_shape=jax.ShapeDtypeStruct((c_pad, f_pad), x.dtype),
        grid_spec=pltpu.PrefetchScalarGridSpec(
            num_scalar_prefetch=0,
            grid=grid,
            in_specs=[
                pl.BlockSpec((1, n_pad), lambda j, k: (0, 0)),    # ids (resident)
                pl.BlockSpec((c_pad, 1), lambda j, k: (0, 0)),    # 1/counts (resident)
                pl.BlockSpec((tn, tf), lambda j, k: (k, j)),      # X tile
            ],
            out_specs=pl.BlockSpec((c_pad, tf), lambda j, k: (0, j)),
            scratch_shapes=[
                pltpu.VMEM((c_pad, tf), jnp.float32),             # sums accumulator
            ],
        ),
        compiler_params=pltpu.CompilerParams(
            dimension_semantics=("parallel", "arbitrary"),
            vmem_limit_bytes=48 << 20,   # <= ~48 MiB keeps the config v7x-safe
        ),
    )(ids_row, inv_counts, x_p)

    return out[:num_clusters, :f]


def cluster_pooling_layer(x, cluster_assignment, num_clusters=None,
                          pool_type="mean"):
    """JAX/Pallas equivalent of ClusterPoolingLayer.forward (pool_type='mean').

    x:                  [N, F] float array of node features
    cluster_assignment: [N]    integer cluster id per node
    num_clusters:       optional static cluster count (pass it to avoid a
                        device->host sync + recompiles)
    returns:            [C, F] pooled cluster features

    Note: ids >= num_clusters are dropped (same as segment_sum with
    num_segments); empty clusters produce zero rows, matching global_mean_pool
    followed by zero-fill of missing segments.
    """
    if pool_type != "mean":
        raise ValueError("Unsupported pool type")
    ids = jnp.asarray(cluster_assignment, dtype=jnp.int32)
    if num_clusters is None:
        # Fallback for API parity with global_mean_pool (blocking host sync).
        num_clusters = int(jax.device_get(jnp.max(ids))) + 1
    return _cluster_mean_pool_call(x, ids, int(num_clusters))


def _reference_mean_pool(x, ids, num_clusters):
    seg_sum = jax.ops.segment_sum(x.astype(jnp.float32), ids,
                                  num_segments=num_clusters)
    seg_cnt = jax.ops.segment_sum(jnp.ones((x.shape[0], 1), jnp.float32), ids,
                                  num_segments=num_clusters)
    return seg_sum / jnp.maximum(seg_cnt, 1.0)


if __name__ == "__main__":
    key = jax.random.PRNGKey(0)
    k_x, k_c, k_x2, k_c2 = jax.random.split(key, 4)

    # --- Test 1: tiny MovieLens-like graph, unaligned shapes, single-tile grid ---
    n_users, n_movies = 8, 16
    n1 = n_users + n_movies               # N = 24
    f1, c1 = 32, 6
    x1 = jax.random.normal(k_x, (n1, f1), dtype=jnp.float32)
    ids1 = jax.random.randint(k_c, (n1,), 0, c1)

    p1 = jax.block_until_ready(
        cluster_pooling_layer(x1, ids1, num_clusters=c1, pool_type="mean"))
    r1 = _reference_mean_pool(x1, jnp.asarray(ids1, jnp.int32), c1)
    assert p1.shape == (c1, f1)
    assert jnp.allclose(p1, r1, atol=1e-4, rtol=1e-4)

    # --- Test 2: multi-tile grid over both N and F (exercises accumulator and
    #     the >=2-parallel-F-blocks / megacore path), unaligned N and F ---
    n2, f2, c2 = 1000, 200, 10
    x2 = jax.random.normal(k_x2, (n2, f2), dtype=jnp.float32)
    ids2 = jax.random.randint(k_c2, (n2,), 0, c2)

    p2 = jax.block_until_ready(
        cluster_pooling_layer(x2, ids2, num_clusters=c2, pool_type="mean"))
    r2 = _reference_mean_pool(x2, jnp.asarray(ids2, jnp.int32), c2)
    assert p2.shape == (c2, f2)
    assert jnp.allclose(p2, r2, atol=1e-4, rtol=1e-4)

    print("KERNEL_OK")
</pallas_src>

<mosaic_0001>
module attributes {stable_mosaic.version = 11 : i64} {
  func.func @_cluster_mean_pool_kernel(%arg0: i32, %arg1: i32, %arg2: memref<1x128xi32, #tpu.memory_space<vmem>>, %arg3: memref<8x1xf32, #tpu.memory_space<vmem>>, %arg4: memref<128x128xf32, #tpu.memory_space<vmem>>, %arg5: memref<8x128xf32, #tpu.memory_space<vmem>>, %arg6: memref<8x128xf32, #tpu.memory_space<vmem>>) attributes {dimension_semantics = [#tpu.dimension_semantics<parallel>, #tpu.dimension_semantics<arbitrary>], iteration_bounds = array<i64: 1, 1>, scalar_prefetch = 0 : i64, scratch_operands = 1 : i64, tpu.core_type = #tpu.core_type<tc>, window_params = [{pipeline_mode = #tpu.pipeline_mode<synchronous>, transform_indices = @transform_0, window_bounds = array<i64: 1, 128>}, {pipeline_mode = #tpu.pipeline_mode<synchronous>, transform_indices = @transform_1, window_bounds = array<i64: 8, 1>}, {transform_indices = @transform_2, window_bounds = array<i64: 128, 128>}, {transform_indices = @transform_3, window_bounds = array<i64: 8, 128>}]} {
    %c0_i32 = arith.constant 0 : i32
    %0 = arith.cmpi eq, %arg1, %c0_i32 : i32
    %1 = arith.extui %0 : i1 to i32
    %c0_i32_0 = arith.constant 0 : i32
    %2 = arith.cmpi ne, %1, %c0_i32_0 : i32
    scf.if %2 {
      %cst_9 = arith.constant 0.000000e+00 : f32
      %21 = vector.broadcast %cst_9 : f32 to vector<8x128xf32>
      %c0_10 = arith.constant 0 : index
      %c0_11 = arith.constant 0 : index
      %22 = vector.load %arg6[%c0_10, %c0_11] : memref<8x128xf32, #tpu.memory_space<vmem>>, vector<8x128xf32>
      tpu.vector_store %arg6[%c0_10, %c0_11], %21 {strides = array<i32>} : memref<8x128xf32, #tpu.memory_space<vmem>>, vector<8x128xf32>,
    } else {
    }
    %c128_i32 = arith.constant 128 : i32
    %3 = arith.muli %arg1, %c128_i32 : i32
    %4 = tpu.assume_multiple %3, 128 : i32
    %c0 = arith.constant 0 : index
    %5 = arith.index_cast %4 : i32 to index
    %6 = vector.load %arg2[%c0, %5] : memref<1x128xi32, #tpu.memory_space<vmem>>, vector<1x128xi32>
    %c0_1 = arith.constant 0 : index
    %c0_2 = arith.constant 0 : index
    %7 = vector.load %arg4[%c0_1, %c0_2] : memref<128x128xf32, #tpu.memory_space<vmem>>, vector<128x128xf32>
    %8 = tpu.iota {dimensions = array<i32: 0>} : vector<8x1xi32>
    %9 = vector.broadcast %8 : vector<8x1xi32> to vector<8x128xi32>
    %10 = vector.broadcast %6 : vector<1x128xi32> to vector<8x128xi32>
    %11 = arith.cmpi eq, %9, %10 : vector<8x128xi32>
    %12 = arith.extui %11 : vector<8x128xi1> to vector<8x128xi32>
    %13 = arith.sitofp %12 : vector<8x128xi32> to vector<8x128xf32>
    %c0_3 = arith.constant 0 : index
    %c0_4 = arith.constant 0 : index
    %14 = vector.load %arg6[%c0_3, %c0_4] : memref<8x128xf32, #tpu.memory_space<vmem>>, vector<8x128xf32>
    %cst = arith.constant dense<0.000000e+00> : vector<8x128xf32>
    %15 = tpu.matmul %13, %7, %cst {dimension_numbers = #tpu.dot_dimension_numbers<[1], [0], [0], [1], [0, 0, 1, 1], [], []>} : vector<8x128xf32>, vector<128x128xf32>, vector<8x128xf32> -> vector<8x128xf32>
    %16 = arith.addf %14, %15 : vector<8x128xf32>
    %c0_5 = arith.constant 0 : index
    %c0_6 = arith.constant 0 : index
    %17 = vector.load %arg6[%c0_5, %c0_6] : memref<8x128xf32, #tpu.memory_space<vmem>>, vector<8x128xf32>
    tpu.vector_store %arg6[%c0_5, %c0_6], %16 {strides = array<i32>} : memref<8x128xf32, #tpu.memory_space<vmem>>, vector<8x128xf32>,
    %c0_i32_7 = arith.constant 0 : i32
    %18 = arith.cmpi eq, %arg1, %c0_i32_7 : i32
    %19 = arith.extui %18 : i1 to i32
    %c0_i32_8 = arith.constant 0 : i32
    %20 = arith.cmpi ne, %19, %c0_i32_8 : i32
    scf.if %20 {
      %c0_9 = arith.constant 0 : index
      %c0_10 = arith.constant 0 : index
      %21 = vector.load %arg6[%c0_9, %c0_10] : memref<8x128xf32, #tpu.memory_space<vmem>>, vector<8x128xf32>
      %c0_11 = arith.constant 0 : index
      %c0_12 = arith.constant 0 : index
      %22 = vector.load %arg3[%c0_11, %c0_12] : memref<8x1xf32, #tpu.memory_space<vmem>>, vector<8x1xf32>
      %23 = vector.broadcast %22 : vector<8x1xf32> to vector<8x128xf32>
      %24 = arith.mulf %21, %23 : vector<8x128xf32>
      %c0_13 = arith.constant 0 : index
      %c0_14 = arith.constant 0 : index
      %25 = vector.load %arg5[%c0_13, %c0_14] : memref<8x128xf32, #tpu.memory_space<vmem>>, vector<8x128xf32>
      tpu.vector_store %arg5[%c0_13, %c0_14], %24 {strides = array<i32>} : memref<8x128xf32, #tpu.memory_space<vmem>>, vector<8x128xf32>,
    } else {
    }
    return
  }
  func.func @transform_0(%arg0: i32, %arg1: i32) -> (i32, i32) {
    %c0_i32 = arith.constant 0 : i32
    %c0_i32_0 = arith.constant 0 : i32
    %c0_i32_1 = arith.constant 0 : i32
    return %c0_i32, %c0_i32_0 : i32, i32
  }
  func.func @transform_1(%arg0: i32, %arg1: i32) -> (i32, i32) {
    %c0_i32 = arith.constant 0 : i32
    %c0_i32_0 = arith.constant 0 : i32
    %c0_i32_1 = arith.constant 0 : i32
    return %c0_i32, %c0_i32_0 : i32, i32
  }
  func.func @transform_2(%arg0: i32, %arg1: i32) -> (i32, i32) {
    %c0_i32 = arith.constant 0 : i32
    return %arg1, %arg0 : i32, i32
  }
  func.func @transform_3(%arg0: i32, %arg1: i32) -> (i32, i32) {
    %c0_i32 = arith.constant 0 : i32
    %c0_i32_0 = arith.constant 0 : i32
    return %c0_i32, %arg0 : i32, i32
  }
}

</mosaic_0001>

<llo_original>
// kernel: _cluster_mean_pool_call.1
$region0: #{_cluster_mean_pool_call.1}
  #allocation0 [shape = 'u32[]', space=smem, size = 0x4, offset = 0x4, fixed_abs, tag = 'smem constant byte address 0x4 - core index']
  #allocation1 [shape = 'u32[144,128]{1,0:T(1,128)}', space=vmem, size = 0x12000, scoped, tag = 'internal scratch']
  #allocation2 [shape = 'f32[8,128]{1,0:T(8,128)}', space=vmem, size = 0x1000, scoped, tag = 'scratch operand']
  %s0 = inlined_call_operand.vmem [shape: s32[1,128], index: 0, kind: input, shape index: {}]
  %s1 = inlined_call_operand.vmem [shape: f32[8,1], index: 1, kind: input, shape index: {}]
  %s2 = inlined_call_operand.vmem [shape: f32[128,128], index: 2, kind: input, shape index: {}]
  %s3 = inlined_call_operand.hbm [shape: f32[8,128], index: 3, kind: output, shape index: {}]
  %s4 = sld [smem:[#allocation0]]
  $region30: #{_cluster_mean_pool_call.1} parent=0
    _
  %s6 = ssub.s32 1, %s4
  %s7 = scalar_select 0, %s6, %s4
  $region1: #{_cluster_mean_pool_call.1} parent=0
    #allocation3 [shape = 'u8[4096]{0}', space=vmem, size = 0x1000, scoped, tag = 'output window, operand 0, single buffered']
    #allocation4 [shape = 's32[1]{0}', space=sflag, size = 0x4, scoped, tag = 'scoped memory for _cluster_mean_pool_call.1']
    %8 = vsyncpa [#allocation4], 0
    // Predicated region
    $region2: #{_cluster_mean_pool_call.1} parent=1 // pred_check
      _
    $region3: #{_cluster_mean_pool_call.1} parent=1 // pred_check_branch
      %10 = sbr.rel (0) target = $region5
    $region4: #{_cluster_mean_pool_call.1} parent=1 // pred_region
      _
    $region5: #{_cluster_mean_pool_call.1} parent=1 // pred_fallthru
      _
    // Predicated region
    $region6: #{_cluster_mean_pool_call.1} parent=1 // pred_check
      _
    $region7: #{_cluster_mean_pool_call.1} parent=1 // pred_check_branch
      %12 = sbr.rel (0) target = $region9
    $region8: #{_cluster_mean_pool_call.1} parent=1 // pred_region
      _
    $region9: #{_cluster_mean_pool_call.1} parent=1 // pred_fallthru
      _
    // Predicated region
    $region10: #{_cluster_mean_pool_call.1} parent=1 // pred_check
      _
    $region11: #{_cluster_mean_pool_call.1} parent=1 // pred_check_branch
      %14 = sbr.rel (0) target = $region13
    $region12: #{_cluster_mean_pool_call.1} parent=1 // pred_region
      _
    $region13: #{_cluster_mean_pool_call.1} parent=1 // pred_fallthru
      _
    %p15 = scmp.eq.s32.totalorder 0, 0
    // Predicated region
    $region14: #{_cluster_mean_pool_call.1} parent=1 // pred_check
      %p16 = pneg %p15
    $region15: #{_cluster_mean_pool_call.1} parent=1 // pred_check_branch
      %18 = sbr.rel (%p16) target = $region17
    $region16: #{_cluster_mean_pool_call.1} parent=1 // pred_region
      %19 = vst [vmem:[#allocation2] sm:$0xff] 0.0
    $region17: #{_cluster_mean_pool_call.1} parent=1 // pred_fallthru
      _
    %s20 = smul.u32 0, 128
    %s21 = sshra.s32 %s20, 7
    %s22 = sand.u32 %s20, 127
    %s23 = scalar_lea.vmem %s0, %s21
    %v24 = vld [vmem:[%s23] sm:$0x1]
    %v25 = vld [vmem:[%s2] sm:$0xff]
    %v26 = vld [vmem:[%s2 + $0x8] sm:$0xff]
    %v27 = vld [vmem:[%s2 + $0x10] sm:$0xff]
    %v28 = vld [vmem:[%s2 + $0x18] sm:$0xff]
    %v29 = vld [vmem:[%s2 + $0x20] sm:$0xff]
    %v30 = vld [vmem:[%s2 + $0x28] sm:$0xff]
    %v31 = vld [vmem:[%s2 + $0x30] sm:$0xff]
    %v32 = vld [vmem:[%s2 + $0x38] sm:$0xff]
    %v33 = vld [vmem:[%s2 + $0x40] sm:$0xff]
    %v34 = vld [vmem:[%s2 + $0x48] sm:$0xff]
    %v35 = vld [vmem:[%s2 + $0x50] sm:$0xff]
    %v36 = vld [vmem:[%s2 + $0x58] sm:$0xff]
    %v37 = vld [vmem:[%s2 + $0x60] sm:$0xff]
    %v38 = vld [vmem:[%s2 + $0x68] sm:$0xff]
    %v39 = vld [vmem:[%s2 + $0x70] sm:$0xff]
    %v40 = vld [vmem:[%s2 + $0x78] sm:$0xff]
    %v41 = vlaneseq
    %v42 = vshrl.u32 %v41, 7
    %v43 = vlaneseq
    %v44 = vshrl.u32 %v43, 7
    %v45 = vsub.s32 0, %v44
    %v46 = vrot.slane %v24, %v45
    %vm47 = vcmp.eq.s32.totalorder %v42, %v46
    %v48 = vsel %vm47, 1, 0
    %v49 = vcvt.s32.f32 %v48
    %v50 = vld [vmem:[#allocation2] sm:$0xff]
    %51 = vmatprep.subr.mxu0 0.0
    %52 = vmatpush1.msra.mxu0 %v25
    %53 = vmatprep.subr.mxu0 0.0
    %54 = vmatpush1.msra.mxu0 %v26
    %55 = vmatprep.subr.mxu0 0.0
    %56 = vmatpush1.msra.mxu0 %v27
    %57 = vmatprep.subr.mxu0 0.0
    %58 = vmatpush1.msra.mxu0 %v28
    %59 = vmatprep.subr.mxu0 0.0
    %60 = vmatpush1.msra.mxu0 %v29
    %61 = vmatprep.subr.mxu0 0.0
    %62 = vmatpush1.msra.mxu0 %v30
    %63 = vmatprep.subr.mxu0 0.0
    %64 = vmatpush1.msra.mxu0 %v31
    %65 = vmatprep.subr.mxu0 0.0
    %66 = vmatpush1.msra.mxu0 %v32
    %67 = vmatprep.subr.mxu0 0.0
    %68 = vmatpush1.msra.mxu0 %v33
    %69 = vmatprep.subr.mxu0 0.0
    %70 = vmatpush1.msra.mxu0 %v34
    %71 = vmatprep.subr.mxu0 0.0
    %72 = vmatpush1.msra.mxu0 %v35
    %73 = vmatprep.subr.mxu0 0.0
    %74 = vmatpush1.msra.mxu0 %v36
    %75 = vmatprep.subr.mxu0 0.0
    %76 = vmatpush1.msra.mxu0 %v37
    %77 = vmatprep.subr.mxu0 0.0
    %78 = vmatpush1.msra.mxu0 %v38
    %79 = vmatprep.subr.mxu0 0.0
    %80 = vmatpush1.msra.mxu0 %v39
    %81 = vmatprep.subr.mxu0 0.0
    %82 = vmatpush1.msra.mxu0 %v40
    %83 = vmatprep.subr.mxu0 0.0
    %84 = vmatpush1.msra.mxu0 0.0
    %85 = vmatprep.subr.mxu0 0.0
    %86 = vmatpush1.msra.mxu0 0.0
    %87 = vmatprep.subr.mxu0 0.0
    %88 = vmatpush1.msra.mxu0 0.0
    %89 = vmatprep.subr.mxu0 0.0
    %90 = vmatpush1.msra.mxu0 0.0
    %91 = vmatprep.subr.mxu0 0.0
    %92 = vmatpush1.msra.mxu0 0.0
    %93 = vmatprep.subr.mxu0 0.0
    %94 = vmatpush1.msra.mxu0 0.0
    %95 = vmatprep.subr.mxu0 0.0
    %96 = vmatpush1.msra.mxu0 0.0
    %97 = vmatprep.subr.mxu0 0.0
    %98 = vmatpush1.msra.mxu0 0.0
    %99 = vmatprep.subr.mxu0 0.0
    %100 = vmatpush1.msra.mxu0 0.0
    %101 = vmatprep.subr.mxu0 0.0
    %102 = vmatpush1.msra.mxu0 0.0
    %103 = vmatprep.subr.mxu0 0.0
    %104 = vmatpush1.msra.mxu0 0.0
    %105 = vmatprep.subr.mxu0 0.0
    %106 = vmatpush1.msra.mxu0 0.0
    %107 = vmatprep.subr.mxu0 0.0
    %108 = vmatpush1.msra.mxu0 0.0
    %109 = vmatprep.subr.mxu0 0.0
    %110 = vmatpush1.msra.mxu0 0.0
    %111 = vmatprep.subr.mxu0 0.0
    %112 = vmatpush1.msra.mxu0 0.0
    %113 = vmatprep.subr.mxu0 0.0
    %114 = vmatpush1.msra.mxu0 0.0
    %115 = vmatprep.mubr.f32.mxu0 0.0
    %116 = vmatmul.mubr.f32.gmra.mrb[0].mxu0 %v49
    %v117 = vpop.f32.mrb[0].mxu0
    %v118 = vadd.f32 0.0, %v117
    %v119 = vpop.f32.mrb[0].mxu0
    %120 = vdwg.mxu0
    %v121 = vadd.f32 %v50, %v118
    %122 = vst [vmem:[#allocation2] sm:$0xff] %v121
    // Predicated region
    $region18: #{_cluster_mean_pool_call.1} parent=1 // pred_check
      %p123 = pneg %p15
    $region19: #{_cluster_mean_pool_call.1} parent=1 // pred_check_branch
      %125 = sbr.rel (%p123) target = $region21
    $region20: #{_cluster_mean_pool_call.1} parent=1 // pred_region
      %v126 = vld [vmem:[#allocation2] sm:$0xff]
      %v127 = vld [vmem:[%s1] sm:$0xff]
      %129 = vset.pattern.permute.xlu0 0
      %130 = vperm.xlu0 %129, %v127
      %v131 = vpop.permute.xlu0 %130
      %v133 = vmul.f32 %v126, %v131
      %134 = vst [vmem:[#allocation3] sm:$0xff] %v133
    $region21: #{_cluster_mean_pool_call.1} parent=1 // pred_fallthru
      _
    // Predicated region
    $region22: #{_cluster_mean_pool_call.1} parent=1 // pred_check
      _
    $region23: #{_cluster_mean_pool_call.1} parent=1 // pred_check_branch
      %136 = sbr.rel (0) target = $region25
    $region24: #{_cluster_mean_pool_call.1} parent=1 // pred_region
      %s138 = ssub.s32 128, 128
      %139 = vsyncadd [#allocation4], %s138
      %s141 = sshll.u32 [#allocation3], 4
      %s142 = int_to_ptr.vmem [resolvable:$true] %s141
      %144 = dma.vmem_to_hbm [thread:$0]  %s142, 128, %s3, [#allocation4]
    $region25: #{_cluster_mean_pool_call.1} parent=1 // pred_fallthru
      _
    // Predicated region
    $region26: #{_cluster_mean_pool_call.1} parent=1 // pred_check
      _
    $region27: #{_cluster_mean_pool_call.1} parent=1 // pred_check_branch
      %146 = sbr.rel (0) target = $region29
    $region28: #{_cluster_mean_pool_call.1} parent=1 // pred_region
      %147 = dma.done [#allocation4], 128
    $region29: #{_cluster_mean_pool_call.1} parent=1 // pred_fallthru
      _
    %148 = vsyncpa [#allocation4], 1

</llo_original>
